<compile_context>
chip_gen: v7x
topology: tpu7x:2x2x1
jax: 0.10.0
libtpu: 0.0.40
codegen_flags: <defaults>
</compile_context>

<pallas_src>
import functools
import math

import jax
import jax.numpy as jnp
from jax.experimental import pallas as pl
from jax.experimental.pallas import tpu as pltpu


def _round_up(x: int, m: int) -> int:
    return ((x + m - 1) // m) * m


def _pool_head_kernel(x_ref, w1_ref, b1_ref, g_ref, be_ref, mu_ref, var_ref,
                      w2_ref, b2_ref, o_ref, *, eps: float):
    # x_ref: (tn, HW, C) layer4 features for tn samples (native dtype).
    x = x_ref[...].astype(jnp.float32)                 # in-kernel cast (review #1)
    hw = x.shape[1]
    pooled = jnp.sum(x, axis=1) * (1.0 / hw)           # AdaptiveAvgPool2d((1,1)) -> (tn, C)
    # 1x1 Conv2d == channel matmul (MXU).
    z = jnp.dot(pooled, w1_ref[...], preferred_element_type=jnp.float32) + b1_ref[...]
    # BatchNorm2d (eval mode) folded to scale/shift; rsqrt goes to the EUP.
    s = g_ref[...] * jax.lax.rsqrt(var_ref[...] + eps)
    t = be_ref[...] - mu_ref[...] * s
    h = jnp.maximum(z * s + t, 0.0)                    # ReLU(inplace=True)
    y = jnp.dot(h, w2_ref[...], preferred_element_type=jnp.float32) + b2_ref[...]
    o_ref[...] = y


def _pool_head_pallas(x_nlc, params, *, eps: float = 1e-5,
                      vmem_block_budget: int = 8 << 20):
    """x_nlc: (N, HW, C) layer4 features. Returns (N, out_dim) float32."""
    N, HW, C = x_nlc.shape
    w1 = params["w1"].astype(jnp.float32)
    w2 = params["w2"].astype(jnp.float32)
    D = w1.shape[1]
    assert w1.shape == (C, D), "conv1 weight must have shape (C_in, out_dim)"
    assert w2.shape == (D, D), "conv2 weight must have shape (out_dim, out_dim)"

    b1, gamma, beta, mu, var, b2 = [
        params[k].reshape(1, D).astype(jnp.float32)
        for k in ("b1", "gamma", "beta", "running_mean", "running_var", "b2")
    ]

    # Row tiling: pad N to a sublane multiple (unmasked stores); one grid step
    # for tiny inputs, otherwise the largest 8-aligned tile within the VMEM
    # budget (the pipeline double-buffers the feature tile).
    itemsize = x_nlc.dtype.itemsize
    row_bytes = HW * C * itemsize
    tn_cap = max(8, min(512, (vmem_block_budget // max(row_bytes, 1)) // 8 * 8))
    n_pad = _round_up(N, 8)
    if n_pad <= tn_cap:
        tn = n_pad                                   # single grid step (review #8)
    else:
        tn = tn_cap
        n_pad = _round_up(N, tn)
    if n_pad != N:
        x_nlc = jnp.pad(x_nlc, ((0, n_pad - N), (0, 0), (0, 0)))
    grid = (n_pad // tn,)

    cost = pl.CostEstimate(
        flops=2 * n_pad * (C * D + D * D) + n_pad * HW * C,
        transcendentals=D,
        bytes_accessed=(n_pad * HW * C * itemsize
                        + (C * D + D * D + 6 * D) * 4
                        + n_pad * D * 4),
    )

    out = pl.pallas_call(
        functools.partial(_pool_head_kernel, eps=eps),
        out_shape=jax.ShapeDtypeStruct((n_pad, D), jnp.float32),
        grid_spec=pltpu.PrefetchScalarGridSpec(
            num_scalar_prefetch=0,
            grid=grid,
            in_specs=[
                pl.BlockSpec((tn, HW, C), lambda i: (i, 0, 0)),  # features: tiled over rows
                pl.BlockSpec((C, D), lambda i: (0, 0)),          # w1 (fetched once, reused)
                pl.BlockSpec((1, D), lambda i: (0, 0)),          # b1
                pl.BlockSpec((1, D), lambda i: (0, 0)),          # gamma
                pl.BlockSpec((1, D), lambda i: (0, 0)),          # beta
                pl.BlockSpec((1, D), lambda i: (0, 0)),          # running_mean
                pl.BlockSpec((1, D), lambda i: (0, 0)),          # running_var
                pl.BlockSpec((D, D), lambda i: (0, 0)),          # w2
                pl.BlockSpec((1, D), lambda i: (0, 0)),          # b2
            ],
            out_specs=pl.BlockSpec((tn, D), lambda i: (i, 0)),
        ),
        compiler_params=pltpu.CompilerParams(
            dimension_semantics=("parallel",),
            vmem_limit_bytes=32 * 1024 * 1024,
        ),
        cost_estimate=cost,
    )(x_nlc, w1, b1, gamma, beta, mu, var, w2, b2)
    return out[:N]


def resnet_feats_forward(features, params, *, eps: float = 1e-5):
    """ResNetFeats.forward for the default config, starting from layer4 features.

    features: (B, T, C, h, w) or (N, C, h, w).  Returns (B, T, out_dim) or
    (N, out_dim) float32 (forward() casts to .float(); NH*NW == 1 after the
    global pool so the trailing squeeze applies).
    """
    assert features.ndim in (4, 5), "expect (N, C, h, w) or (B, T, C, h, w)"
    reshaped = features.ndim == 5
    x = features.reshape((-1,) + features.shape[-3:])        # inputs.reshape((-1, C, H, W))
    N, C, h, w = x.shape
    # Layout glue only (wrapper-side transpose/reshape): channels -> lane axis.
    x_nlc = jnp.transpose(x, (0, 2, 3, 1)).reshape(N, h * w, C)
    y = _pool_head_pallas(x_nlc, params, eps=eps)            # (N, out_dim)
    if reshaped:
        y = y.reshape(features.shape[0], features.shape[1], y.shape[-1])
    return y


def reference_forward(features, params, *, eps: float = 1e-5):
    reshaped = features.ndim == 5
    x = features.reshape((-1,) + features.shape[-3:]).astype(jnp.float32)
    pooled = x.mean(axis=(2, 3))
    z = pooled @ params["w1"].astype(jnp.float32) + params["b1"]
    s = params["gamma"] / jnp.sqrt(params["running_var"] + eps)
    t = params["beta"] - params["running_mean"] * s
    hrelu = jnp.maximum(z * s + t, 0.0)
    y = hrelu @ params["w2"].astype(jnp.float32) + params["b2"]
    if reshaped:
        y = y.reshape(features.shape[0], features.shape[1], -1)
    return y


if __name__ == "__main__":
    # Small stand-in shapes: C_feat=256 stands in for the 2048-channel ResNet-50
    # layer4 output, out_dim=128 for the module's default out_dim=256.
    B, T = 2, 3
    C_feat, h, w = 256, 4, 4
    out_dim = 128

    keys = jax.random.split(jax.random.PRNGKey(0), 9)
    feats5 = jax.random.normal(keys[0], (B, T, C_feat, h, w), dtype=jnp.float32)
    params = dict(
        w1=jax.random.normal(keys[1], (C_feat, out_dim), jnp.float32) * (1.0 / math.sqrt(C_feat)),
        b1=0.1 * jax.random.normal(keys[2], (out_dim,), jnp.float32),
        gamma=1.0 + 0.1 * jax.random.normal(keys[3], (out_dim,), jnp.float32),
        beta=0.1 * jax.random.normal(keys[4], (out_dim,), jnp.float32),
        running_mean=0.1 * jax.random.normal(keys[5], (out_dim,), jnp.float32),
        running_var=jax.random.uniform(keys[6], (out_dim,), jnp.float32, 0.5, 1.5),
        w2=jax.random.normal(keys[7], (out_dim, out_dim), jnp.float32) * (1.0 / math.sqrt(out_dim)),
        b2=0.1 * jax.random.normal(keys[8], (out_dim,), jnp.float32),
    )

    # 5-D (B, T, ...) path -> (B, T, out_dim)
    out5 = jax.block_until_ready(resnet_feats_forward(feats5, params))
    ref5 = reference_forward(feats5, params)
    assert out5.shape == (B, T, out_dim)
    assert jnp.allclose(out5, ref5, rtol=2e-2, atol=2e-2), "5-D path mismatch vs reference"

    # 4-D (N, C, h, w) path -> (N, out_dim)
    feats4 = feats5[:, 0]
    out4 = jax.block_until_ready(resnet_feats_forward(feats4, params))
    ref4 = reference_forward(feats4, params)
    assert out4.shape == (B, out_dim)
    assert jnp.allclose(out4, ref4, rtol=2e-2, atol=2e-2), "4-D path mismatch vs reference"

    print("KERNEL_OK")
</pallas_src>

<mosaic_0001>
module attributes {stable_mosaic.version = 11 : i64} {
  func.func @_pool_head_kernel(%arg0: i32, %arg1: memref<8x16x256xf32, #tpu.memory_space<vmem>>, %arg2: memref<256x128xf32, #tpu.memory_space<vmem>>, %arg3: memref<1x128xf32, #tpu.memory_space<vmem>>, %arg4: memref<1x128xf32, #tpu.memory_space<vmem>>, %arg5: memref<1x128xf32, #tpu.memory_space<vmem>>, %arg6: memref<1x128xf32, #tpu.memory_space<vmem>>, %arg7: memref<1x128xf32, #tpu.memory_space<vmem>>, %arg8: memref<128x128xf32, #tpu.memory_space<vmem>>, %arg9: memref<1x128xf32, #tpu.memory_space<vmem>>, %arg10: memref<8x128xf32, #tpu.memory_space<vmem>>) attributes {dimension_semantics = [#tpu.dimension_semantics<parallel>], iteration_bounds = array<i64: 1>, scalar_prefetch = 0 : i64, scratch_operands = 0 : i64, tpu.core_type = #tpu.core_type<tc>, window_params = [{transform_indices = @transform_0, window_bounds = array<i64: 8, 16, 256>}, {pipeline_mode = #tpu.pipeline_mode<synchronous>, transform_indices = @transform_1, window_bounds = array<i64: 256, 128>}, {pipeline_mode = #tpu.pipeline_mode<synchronous>, transform_indices = @transform_2, window_bounds = array<i64: 1, 128>}, {pipeline_mode = #tpu.pipeline_mode<synchronous>, transform_indices = @transform_3, window_bounds = array<i64: 1, 128>}, {pipeline_mode = #tpu.pipeline_mode<synchronous>, transform_indices = @transform_4, window_bounds = array<i64: 1, 128>}, {pipeline_mode = #tpu.pipeline_mode<synchronous>, transform_indices = @transform_5, window_bounds = array<i64: 1, 128>}, {pipeline_mode = #tpu.pipeline_mode<synchronous>, transform_indices = @transform_6, window_bounds = array<i64: 1, 128>}, {pipeline_mode = #tpu.pipeline_mode<synchronous>, transform_indices = @transform_7, window_bounds = array<i64: 128, 128>}, {pipeline_mode = #tpu.pipeline_mode<synchronous>, transform_indices = @transform_8, window_bounds = array<i64: 1, 128>}, {transform_indices = @transform_9, window_bounds = array<i64: 8, 128>}]} {
    %c0 = arith.constant 0 : index
    %c0_0 = arith.constant 0 : index
    %c0_1 = arith.constant 0 : index
    %0 = vector.load %arg1[%c0, %c0_0, %c0_1] : memref<8x16x256xf32, #tpu.memory_space<vmem>>, vector<8x16x256xf32>
    %cst = arith.constant dense<0.000000e+00> : vector<8x256xf32>
    %1 = vector.multi_reduction <add>, %0, %cst [1] : vector<8x16x256xf32> to vector<8x256xf32>
    %cst_2 = arith.constant 6.250000e-02 : f32
    %2 = vector.broadcast %cst_2 : f32 to vector<8x256xf32>
    %3 = arith.mulf %1, %2 : vector<8x256xf32>
    %c0_3 = arith.constant 0 : index
    %c0_4 = arith.constant 0 : index
    %4 = vector.load %arg2[%c0_3, %c0_4] : memref<256x128xf32, #tpu.memory_space<vmem>>, vector<256x128xf32>
    %cst_5 = arith.constant dense<0.000000e+00> : vector<8x128xf32>
    %5 = tpu.matmul %3, %4, %cst_5 {dimension_numbers = #tpu.dot_dimension_numbers<[1], [0], [0], [1], [0, 0, 1, 1], [], []>} : vector<8x256xf32>, vector<256x128xf32>, vector<8x128xf32> -> vector<8x128xf32>
    %c0_6 = arith.constant 0 : index
    %c0_7 = arith.constant 0 : index
    %6 = vector.load %arg3[%c0_6, %c0_7] : memref<1x128xf32, #tpu.memory_space<vmem>>, vector<1x128xf32>
    %7 = vector.broadcast %6 : vector<1x128xf32> to vector<8x128xf32>
    %8 = arith.addf %5, %7 : vector<8x128xf32>
    %c0_8 = arith.constant 0 : index
    %c0_9 = arith.constant 0 : index
    %9 = vector.load %arg4[%c0_8, %c0_9] : memref<1x128xf32, #tpu.memory_space<vmem>>, vector<1x128xf32>
    %c0_10 = arith.constant 0 : index
    %c0_11 = arith.constant 0 : index
    %10 = vector.load %arg7[%c0_10, %c0_11] : memref<1x128xf32, #tpu.memory_space<vmem>>, vector<1x128xf32>
    %cst_12 = arith.constant 9.99999974E-6 : f32
    %11 = vector.broadcast %cst_12 : f32 to vector<1x128xf32>
    %12 = arith.addf %10, %11 : vector<1x128xf32>
    %13 = math.rsqrt %12 : vector<1x128xf32>
    %14 = arith.mulf %9, %13 : vector<1x128xf32>
    %c0_13 = arith.constant 0 : index
    %c0_14 = arith.constant 0 : index
    %15 = vector.load %arg5[%c0_13, %c0_14] : memref<1x128xf32, #tpu.memory_space<vmem>>, vector<1x128xf32>
    %c0_15 = arith.constant 0 : index
    %c0_16 = arith.constant 0 : index
    %16 = vector.load %arg6[%c0_15, %c0_16] : memref<1x128xf32, #tpu.memory_space<vmem>>, vector<1x128xf32>
    %17 = arith.mulf %16, %14 : vector<1x128xf32>
    %18 = arith.subf %15, %17 : vector<1x128xf32>
    %19 = vector.broadcast %14 : vector<1x128xf32> to vector<8x128xf32>
    %20 = arith.mulf %8, %19 : vector<8x128xf32>
    %21 = vector.broadcast %18 : vector<1x128xf32> to vector<8x128xf32>
    %22 = arith.addf %20, %21 : vector<8x128xf32>
    %cst_17 = arith.constant 0.000000e+00 : f32
    %23 = vector.broadcast %cst_17 : f32 to vector<8x128xf32>
    %24 = arith.maximumf %22, %23 : vector<8x128xf32>
    %c0_18 = arith.constant 0 : index
    %c0_19 = arith.constant 0 : index
    %25 = vector.load %arg8[%c0_18, %c0_19] : memref<128x128xf32, #tpu.memory_space<vmem>>, vector<128x128xf32>
    %cst_20 = arith.constant dense<0.000000e+00> : vector<8x128xf32>
    %26 = tpu.matmul %24, %25, %cst_20 {dimension_numbers = #tpu.dot_dimension_numbers<[1], [0], [0], [1], [0, 0, 1, 1], [], []>} : vector<8x128xf32>, vector<128x128xf32>, vector<8x128xf32> -> vector<8x128xf32>
    %c0_21 = arith.constant 0 : index
    %c0_22 = arith.constant 0 : index
    %27 = vector.load %arg9[%c0_21, %c0_22] : memref<1x128xf32, #tpu.memory_space<vmem>>, vector<1x128xf32>
    %28 = vector.broadcast %27 : vector<1x128xf32> to vector<8x128xf32>
    %29 = arith.addf %26, %28 : vector<8x128xf32>
    %c0_23 = arith.constant 0 : index
    %c0_24 = arith.constant 0 : index
    %30 = vector.load %arg10[%c0_23, %c0_24] : memref<8x128xf32, #tpu.memory_space<vmem>>, vector<8x128xf32>
    tpu.vector_store %arg10[%c0_23, %c0_24], %29 {strides = array<i32>} : memref<8x128xf32, #tpu.memory_space<vmem>>, vector<8x128xf32>,
    return
  }
  func.func @transform_0(%arg0: i32) -> (i32, i32, i32) {
    %c0_i32 = arith.constant 0 : i32
    %c0_i32_0 = arith.constant 0 : i32
    %c0_i32_1 = arith.constant 0 : i32
    return %arg0, %c0_i32, %c0_i32_0 : i32, i32, i32
  }
  func.func @transform_1(%arg0: i32) -> (i32, i32) {
    %c0_i32 = arith.constant 0 : i32
    %c0_i32_0 = arith.constant 0 : i32
    %c0_i32_1 = arith.constant 0 : i32
    return %c0_i32, %c0_i32_0 : i32, i32
  }
  func.func @transform_2(%arg0: i32) -> (i32, i32) {
    %c0_i32 = arith.constant 0 : i32
    %c0_i32_0 = arith.constant 0 : i32
    %c0_i32_1 = arith.constant 0 : i32
    return %c0_i32, %c0_i32_0 : i32, i32
  }
  func.func @transform_3(%arg0: i32) -> (i32, i32) {
    %c0_i32 = arith.constant 0 : i32
    %c0_i32_0 = arith.constant 0 : i32
    %c0_i32_1 = arith.constant 0 : i32
    return %c0_i32, %c0_i32_0 : i32, i32
  }
  func.func @transform_4(%arg0: i32) -> (i32, i32) {
    %c0_i32 = arith.constant 0 : i32
    %c0_i32_0 = arith.constant 0 : i32
    %c0_i32_1 = arith.constant 0 : i32
    return %c0_i32, %c0_i32_0 : i32, i32
  }
  func.func @transform_5(%arg0: i32) -> (i32, i32) {
    %c0_i32 = arith.constant 0 : i32
    %c0_i32_0 = arith.constant 0 : i32
    %c0_i32_1 = arith.constant 0 : i32
    return %c0_i32, %c0_i32_0 : i32, i32
  }
  func.func @transform_6(%arg0: i32) -> (i32, i32) {
    %c0_i32 = arith.constant 0 : i32
    %c0_i32_0 = arith.constant 0 : i32
    %c0_i32_1 = arith.constant 0 : i32
    return %c0_i32, %c0_i32_0 : i32, i32
  }
  func.func @transform_7(%arg0: i32) -> (i32, i32) {
    %c0_i32 = arith.constant 0 : i32
    %c0_i32_0 = arith.constant 0 : i32
    %c0_i32_1 = arith.constant 0 : i32
    return %c0_i32, %c0_i32_0 : i32, i32
  }
  func.func @transform_8(%arg0: i32) -> (i32, i32) {
    %c0_i32 = arith.constant 0 : i32
    %c0_i32_0 = arith.constant 0 : i32
    %c0_i32_1 = arith.constant 0 : i32
    return %c0_i32, %c0_i32_0 : i32, i32
  }
  func.func @transform_9(%arg0: i32) -> (i32, i32) {
    %c0_i32 = arith.constant 0 : i32
    %c0_i32_0 = arith.constant 0 : i32
    return %arg0, %c0_i32 : i32, i32
  }
}

</mosaic_0001>

<llo_original>
// kernel: tpu_custom_call.1
$region0: #{tpu_custom_call.1}
  #allocation0 [shape = 'u32[]', space=smem, size = 0x4, offset = 0x4, fixed_abs, tag = 'smem constant byte address 0x4 - core index']
  #allocation1 [shape = 'u32[144,128]{1,0:T(1,128)}', space=vmem, size = 0x12000, scoped, tag = 'internal scratch']
  %s0 = inlined_call_operand.hbm [shape: f32[8,16,256], index: 0, kind: input, shape index: {}]
  %s1 = inlined_call_operand.hbm [shape: f32[256,128], index: 1, kind: input, shape index: {}]
  %s2 = inlined_call_operand.vmem [shape: f32[1,128], index: 2, kind: input, shape index: {}]
  %s3 = inlined_call_operand.vmem [shape: f32[1,128], index: 3, kind: input, shape index: {}]
  %s4 = inlined_call_operand.vmem [shape: f32[1,128], index: 4, kind: input, shape index: {}]
  %s5 = inlined_call_operand.vmem [shape: f32[1,128], index: 5, kind: input, shape index: {}]
  %s6 = inlined_call_operand.vmem [shape: f32[1,128], index: 6, kind: input, shape index: {}]
  %s7 = inlined_call_operand.hbm [shape: f32[128,128], index: 7, kind: input, shape index: {}]
  %s8 = inlined_call_operand.vmem [shape: f32[1,128], index: 8, kind: input, shape index: {}]
  %s9 = inlined_call_operand.hbm [shape: f32[8,128], index: 9, kind: output, shape index: {}]
  %s10 = sld [smem:[#allocation0]]
  $region58: #{tpu_custom_call.1} parent=0
    _
  %s12 = ssub.s32 1, %s10
  %s13 = scalar_select 0, %s12, %s10
  $region1: #{tpu_custom_call.1} parent=0
    #allocation2 [shape = 'u8[131072]{0}', space=vmem, size = 0x20000, scoped, tag = 'input window, operand 0, single buffered']
    #allocation3 [shape = 's32[1]{0}', space=sflag, size = 0x4, scoped, tag = 'scoped memory for tpu_custom_call.1']
    #allocation4 [shape = 's32[1]{0}', space=sflag, size = 0x4, scoped, tag = 'scoped memory for tpu_custom_call.1']
    #allocation5 [shape = 'u8[131072]{0}', space=vmem, size = 0x20000, scoped, tag = 'input window, operand 1, single buffered']
    #allocation6 [shape = 's32[1]{0}', space=sflag, size = 0x4, scoped, tag = 'scoped memory for tpu_custom_call.1']
    #allocation7 [shape = 'u8[65536]{0}', space=vmem, size = 0x10000, scoped, tag = 'input window, operand 7, single buffered']
    #allocation8 [shape = 'u8[4096]{0}', space=vmem, size = 0x1000, scoped, tag = 'output window, operand 0, single buffered']
    %14 = vsyncpa [#allocation3], 0
    %15 = vsyncpa [#allocation6], 0
    %16 = vsyncpa [#allocation4], 0
    // Predicated region
    $region2: #{tpu_custom_call.1} parent=1 // pred_check
      _
    $region3: #{tpu_custom_call.1} parent=1 // pred_check_branch
      %18 = sbr.rel (0) target = $region5
    $region4: #{tpu_custom_call.1} parent=1 // pred_region
      %s20 = ssub.s32 4096, 4096
      %21 = vsyncadd [#allocation3], %s20
      %s22 = sshll.u32 [#allocation2], 4
      %s23 = int_to_ptr.vmem [resolvable:$true] %s22
      %28 = dma.hbm_to_vmem [thread:$0]  %s0, 4096, %s23, [#allocation3], 256, 256, 16
    $region5: #{tpu_custom_call.1} parent=1 // pred_fallthru
      _
    // Predicated region
    $region6: #{tpu_custom_call.1} parent=1 // pred_check
      _
    $region7: #{tpu_custom_call.1} parent=1 // pred_check_branch
      %30 = sbr.rel (0) target = $region9
    $region8: #{tpu_custom_call.1} parent=1 // pred_region
      %s32 = ssub.s32 4096, 4096
      %33 = vsyncadd [#allocation6], %s32
      %s34 = sshll.u32 [#allocation5], 4
      %s35 = int_to_ptr.vmem [resolvable:$true] %s34
      %40 = dma.hbm_to_vmem [thread:$0]  %s1, 4096, %s35, [#allocation6], 128, 128, 8
    $region9: #{tpu_custom_call.1} parent=1 // pred_fallthru
      _
    // Predicated region
    $region10: #{tpu_custom_call.1} parent=1 // pred_check
      _
    $region11: #{tpu_custom_call.1} parent=1 // pred_check_branch
      %42 = sbr.rel (0) target = $region13
    $region12: #{tpu_custom_call.1} parent=1 // pred_region
      _
    $region13: #{tpu_custom_call.1} parent=1 // pred_fallthru
      _
    // Predicated region
    $region14: #{tpu_custom_call.1} parent=1 // pred_check
      _
    $region15: #{tpu_custom_call.1} parent=1 // pred_check_branch
      %44 = sbr.rel (0) target = $region17
    $region16: #{tpu_custom_call.1} parent=1 // pred_region
      _
    $region17: #{tpu_custom_call.1} parent=1 // pred_fallthru
      _
    // Predicated region
    $region18: #{tpu_custom_call.1} parent=1 // pred_check
      _
    $region19: #{tpu_custom_call.1} parent=1 // pred_check_branch
      %46 = sbr.rel (0) target = $region21
    $region20: #{tpu_custom_call.1} parent=1 // pred_region
      _
    $region21: #{tpu_custom_call.1} parent=1 // pred_fallthru
      _
    // Predicated region
    $region22: #{tpu_custom_call.1} parent=1 // pred_check
      _
    $region23: #{tpu_custom_call.1} parent=1 // pred_check_branch
      %48 = sbr.rel (0) target = $region25
    $region24: #{tpu_custom_call.1} parent=1 // pred_region
      _
    $region25: #{tpu_custom_call.1} parent=1 // pred_fallthru
      _
    // Predicated region
    $region26: #{tpu_custom_call.1} parent=1 // pred_check
      _
    $region27: #{tpu_custom_call.1} parent=1 // pred_check_branch
      %50 = sbr.rel (0) target = $region29
    $region28: #{tpu_custom_call.1} parent=1 // pred_region
      _
    $region29: #{tpu_custom_call.1} parent=1 // pred_fallthru
      _
    // Predicated region
    $region30: #{tpu_custom_call.1} parent=1 // pred_check
      _
    $region31: #{tpu_custom_call.1} parent=1 // pred_check_branch
      %52 = sbr.rel (0) target = $region33
    $region32: #{tpu_custom_call.1} parent=1 // pred_region
      %s54 = ssub.s32 2048, 2048
      %55 = vsyncadd [#allocation6], %s54
      %s56 = sshll.u32 [#allocation7], 4
      %s57 = int_to_ptr.vmem [resolvable:$true] %s56
      %62 = dma.hbm_to_vmem [thread:$0]  %s7, 2048, %s57, [#allocation6], 128, 128, 8
    $region33: #{tpu_custom_call.1} parent=1 // pred_fallthru
      _
    // Predicated region
    $region34: #{tpu_custom_call.1} parent=1 // pred_check
      _
    $region35: #{tpu_custom_call.1} parent=1 // pred_check_branch
      %64 = sbr.rel (0) target = $region37
    $region36: #{tpu_custom_call.1} parent=1 // pred_region
      _
    $region37: #{tpu_custom_call.1} parent=1 // pred_fallthru
      _
    // Predicated region
    $region38: #{tpu_custom_call.1} parent=1 // pred_check
      _
    $region39: #{tpu_custom_call.1} parent=1 // pred_check_branch
      %66 = sbr.rel (0) target = $region41
    $region40: #{tpu_custom_call.1} parent=1 // pred_region
      %67 = dma.done [#allocation3], 4096
    $region41: #{tpu_custom_call.1} parent=1 // pred_fallthru
      _
    // Predicated region
    $region42: #{tpu_custom_call.1} parent=1 // pred_check
      _
    $region43: #{tpu_custom_call.1} parent=1 // pred_check_branch
      %69 = sbr.rel (0) target = $region45
    $region44: #{tpu_custom_call.1} parent=1 // pred_region
      %70 = dma.done [#allocation6], 4096
    $region45: #{tpu_custom_call.1} parent=1 // pred_fallthru
      _
    // Predicated region
    $region46: #{tpu_custom_call.1} parent=1 // pred_check
      _
    $region47: #{tpu_custom_call.1} parent=1 // pred_check_branch
      %72 = sbr.rel (0) target = $region49
    $region48: #{tpu_custom_call.1} parent=1 // pred_region
      %73 = dma.done [#allocation6], 2048
    $region49: #{tpu_custom_call.1} parent=1 // pred_fallthru
      _
    %v74 = vld [vmem:[#allocation2] sm:$0xff]
    %v75 = vld [vmem:[#allocation2 + $0x8] sm:$0xff]
    %v76 = vld [vmem:[#allocation2 + $0x10] sm:$0xff]
    %v77 = vld [vmem:[#allocation2 + $0x18] sm:$0xff]
    %v78 = vld [vmem:[#allocation2 + $0x20] sm:$0xff]
    %v79 = vld [vmem:[#allocation2 + $0x28] sm:$0xff]
    %v80 = vld [vmem:[#allocation2 + $0x30] sm:$0xff]
    %v81 = vld [vmem:[#allocation2 + $0x38] sm:$0xff]
    %v82 = vld [vmem:[#allocation2 + $0x40] sm:$0xff]
    %v83 = vld [vmem:[#allocation2 + $0x48] sm:$0xff]
    %v84 = vld [vmem:[#allocation2 + $0x50] sm:$0xff]
    %v85 = vld [vmem:[#allocation2 + $0x58] sm:$0xff]
    %v86 = vld [vmem:[#allocation2 + $0x60] sm:$0xff]
    %v87 = vld [vmem:[#allocation2 + $0x68] sm:$0xff]
    %v88 = vld [vmem:[#allocation2 + $0x70] sm:$0xff]
    %v89 = vld [vmem:[#allocation2 + $0x78] sm:$0xff]
    %v90 = vld [vmem:[#allocation2 + $0x80] sm:$0xff]
    %v91 = vld [vmem:[#allocation2 + $0x88] sm:$0xff]
    %v92 = vld [vmem:[#allocation2 + $0x90] sm:$0xff]
    %v93 = vld [vmem:[#allocation2 + $0x98] sm:$0xff]
    %v94 = vld [vmem:[#allocation2 + $0xa0] sm:$0xff]
    %v95 = vld [vmem:[#allocation2 + $0xa8] sm:$0xff]
    %v96 = vld [vmem:[#allocation2 + $0xb0] sm:$0xff]
    %v97 = vld [vmem:[#allocation2 + $0xb8] sm:$0xff]
    %v98 = vld [vmem:[#allocation2 + $0xc0] sm:$0xff]
    %v99 = vld [vmem:[#allocation2 + $0xc8] sm:$0xff]
    %v100 = vld [vmem:[#allocation2 + $0xd0] sm:$0xff]
    %v101 = vld [vmem:[#allocation2 + $0xd8] sm:$0xff]
    %v102 = vld [vmem:[#allocation2 + $0xe0] sm:$0xff]
    %v103 = vld [vmem:[#allocation2 + $0xe8] sm:$0xff]
    %v104 = vld [vmem:[#allocation2 + $0xf0] sm:$0xff]
    %v105 = vld [vmem:[#allocation2 + $0xf8] sm:$0xff]
    %v106 = vadd.f32 %v74, %v76
    %v107 = vrot.slane %v106, 4
    %v108 = vadd.f32 %v106, %v107
    %v109 = vrot.slane %v108, 2
    %v110 = vadd.f32 %v108, %v109
    %v111 = vrot.slane %v110, 1
    %v112 = vadd.f32 %v110, %v111
    %v113 = vadd.f32 %v75, %v77
    %v114 = vrot.slane %v113, 4
    %v115 = vadd.f32 %v113, %v114
    %v116 = vrot.slane %v115, 2
    %v117 = vadd.f32 %v115, %v116
    %v118 = vrot.slane %v117, 1
    %v119 = vadd.f32 %v117, %v118
    %v120 = vadd.f32 %v78, %v80
    %v121 = vrot.slane %v120, 4
    %v122 = vadd.f32 %v120, %v121
    %v123 = vrot.slane %v122, 2
    %v124 = vadd.f32 %v122, %v123
    %v125 = vrot.slane %v124, 1
    %v126 = vadd.f32 %v124, %v125
    %v127 = vadd.f32 %v79, %v81
    %v128 = vrot.slane %v127, 4
    %v129 = vadd.f32 %v127, %v128
    %v130 = vrot.slane %v129, 2
    %v131 = vadd.f32 %v129, %v130
    %v132 = vrot.slane %v131, 1
    %v133 = vadd.f32 %v131, %v132
    %v134 = vadd.f32 %v82, %v84
    %v135 = vrot.slane %v134, 4
    %v136 = vadd.f32 %v134, %v135
    %v137 = vrot.slane %v136, 2
    %v138 = vadd.f32 %v136, %v137
    %v139 = vrot.slane %v138, 1
    %v140 = vadd.f32 %v138, %v139
    %v141 = vadd.f32 %v83, %v85
    %v142 = vrot.slane %v141, 4
    %v143 = vadd.f32 %v141, %v142
    %v144 = vrot.slane %v143, 2
    %v145 = vadd.f32 %v143, %v144
    %v146 = vrot.slane %v145, 1
    %v147 = vadd.f32 %v145, %v146
    %v148 = vadd.f32 %v86, %v88
    %v149 = vrot.slane %v148, 4
    %v150 = vadd.f32 %v148, %v149
    %v151 = vrot.slane %v150, 2
    %v152 = vadd.f32 %v150, %v151
    %v153 = vrot.slane %v152, 1
    %v154 = vadd.f32 %v152, %v153
    %v155 = vadd.f32 %v87, %v89
    %v156 = vrot.slane %v155, 4
    %v157 = vadd.f32 %v155, %v156
    %v158 = vrot.slane %v157, 2
    %v159 = vadd.f32 %v157, %v158
    %v160 = vrot.slane %v159, 1
    %v161 = vadd.f32 %v159, %v160
    %v162 = vadd.f32 %v90, %v92
    %v163 = vrot.slane %v162, 4
    %v164 = vadd.f32 %v162, %v163
    %v165 = vrot.slane %v164, 2
    %v166 = vadd.f32 %v164, %v165
    %v167 = vrot.slane %v166, 1
    %v168 = vadd.f32 %v166, %v167
    %v169 = vadd.f32 %v91, %v93
    %v170 = vrot.slane %v169, 4
    %v171 = vadd.f32 %v169, %v170
    %v172 = vrot.slane %v171, 2
    %v173 = vadd.f32 %v171, %v172
    %v174 = vrot.slane %v173, 1
    %v175 = vadd.f32 %v173, %v174
    %v176 = vadd.f32 %v94, %v96
    %v177 = vrot.slane %v176, 4
    %v178 = vadd.f32 %v176, %v177
    %v179 = vrot.slane %v178, 2
    %v180 = vadd.f32 %v178, %v179
    %v181 = vrot.slane %v180, 1
    %v182 = vadd.f32 %v180, %v181
    %v183 = vadd.f32 %v95, %v97
    %v184 = vrot.slane %v183, 4
    %v185 = vadd.f32 %v183, %v184
    %v186 = vrot.slane %v185, 2
    %v187 = vadd.f32 %v185, %v186
    %v188 = vrot.slane %v187, 1
    %v189 = vadd.f32 %v187, %v188
    %v190 = vadd.f32 %v98, %v100
    %v191 = vrot.slane %v190, 4
    %v192 = vadd.f32 %v190, %v191
    %v193 = vrot.slane %v192, 2
    %v194 = vadd.f32 %v192, %v193
    %v195 = vrot.slane %v194, 1
    %v196 = vadd.f32 %v194, %v195
    %v197 = vadd.f32 %v99, %v101
    %v198 = vrot.slane %v197, 4
    %v199 = vadd.f32 %v197, %v198
    %v200 = vrot.slane %v199, 2
    %v201 = vadd.f32 %v199, %v200
    %v202 = vrot.slane %v201, 1
    %v203 = vadd.f32 %v201, %v202
    %v204 = vadd.f32 %v102, %v104
    %v205 = vrot.slane %v204, 4
    %v206 = vadd.f32 %v204, %v205
    %v207 = vrot.slane %v206, 2
    %v208 = vadd.f32 %v206, %v207
    %v209 = vrot.slane %v208, 1
    %v210 = vadd.f32 %v208, %v209
    %v211 = vadd.f32 %v103, %v105
    %v212 = vrot.slane %v211, 4
    %v213 = vadd.f32 %v211, %v212
    %v214 = vrot.slane %v213, 2
    %v215 = vadd.f32 %v213, %v214
    %v216 = vrot.slane %v215, 1
    %v217 = vadd.f32 %v215, %v216
    %v218 = vmul.f32 %v112, 0.0625
    %v219 = vmul.f32 %v119, 0.0625
    %v220 = vmul.f32 %v126, 0.0625
    %v221 = vmul.f32 %v133, 0.0625
    %v222 = vmul.f32 %v140, 0.0625
    %v223 = vmul.f32 %v147, 0.0625
    %v224 = vmul.f32 %v154, 0.0625
    %v225 = vmul.f32 %v161, 0.0625
    %v226 = vmul.f32 %v168, 0.0625
    %v227 = vmul.f32 %v175, 0.0625
    %v228 = vmul.f32 %v182, 0.0625
    %v229 = vmul.f32 %v189, 0.0625
    %v230 = vmul.f32 %v196, 0.0625
    %v231 = vmul.f32 %v203, 0.0625
    %v232 = vmul.f32 %v210, 0.0625
    %v233 = vmul.f32 %v217, 0.0625
    %v234 = vld [vmem:[#allocation5] sm:$0xff]
    %v235 = vld [vmem:[#allocation5 + $0x8] sm:$0xff]
    %v236 = vld [vmem:[#allocation5 + $0x10] sm:$0xff]
    %v237 = vld [vmem:[#allocation5 + $0x18] sm:$0xff]
    %v238 = vld [vmem:[#allocation5 + $0x20] sm:$0xff]
    %v239 = vld [vmem:[#allocation5 + $0x28] sm:$0xff]
    %v240 = vld [vmem:[#allocation5 + $0x30] sm:$0xff]
    %v241 = vld [vmem:[#allocation5 + $0x38] sm:$0xff]
    %v242 = vld [vmem:[#allocation5 + $0x40] sm:$0xff]
    %v243 = vld [vmem:[#allocation5 + $0x48] sm:$0xff]
    %v244 = vld [vmem:[#allocation5 + $0x50] sm:$0xff]
    %v245 = vld [vmem:[#allocation5 + $0x58] sm:$0xff]
    %v246 = vld [vmem:[#allocation5 + $0x60] sm:$0xff]
    %v247 = vld [vmem:[#allocation5 + $0x68] sm:$0xff]
    %v248 = vld [vmem:[#allocation5 + $0x70] sm:$0xff]
    %v249 = vld [vmem:[#allocation5 + $0x78] sm:$0xff]
    %v250 = vld [vmem:[#allocation5 + $0x80] sm:$0xff]
    %v251 = vld [vmem:[#allocation5 + $0x88] sm:$0xff]
    %v252 = vld [vmem:[#allocation5 + $0x90] sm:$0xff]
    %v253 = vld [vmem:[#allocation5 + $0x98] sm:$0xff]
    %v254 = vld [vmem:[#allocation5 + $0xa0] sm:$0xff]
    %v255 = vld [vmem:[#allocation5 + $0xa8] sm:$0xff]
    %v256 = vld [vmem:[#allocation5 + $0xb0] sm:$0xff]
    %v257 = vld [vmem:[#allocation5 + $0xb8] sm:$0xff]
    %v258 = vld [vmem:[#allocation5 + $0xc0] sm:$0xff]
    %v259 = vld [vmem:[#allocation5 + $0xc8] sm:$0xff]
    %v260 = vld [vmem:[#allocation5 + $0xd0] sm:$0xff]
    %v261 = vld [vmem:[#allocation5 + $0xd8] sm:$0xff]
    %v262 = vld [vmem:[#allocation5 + $0xe0] sm:$0xff]
    %v263 = vld [vmem:[#allocation5 + $0xe8] sm:$0xff]
    %v264 = vld [vmem:[#allocation5 + $0xf0] sm:$0xff]
    %v265 = vld [vmem:[#allocation5 + $0xf8] sm:$0xff]
    %v266 = vld [vmem:[%s2] sm:$0x1]
    %v268 = vlaneseq
    %v269 = vshrl.u32 %v268, 7
    %v270 = vsub.s32 0, %v269
    %v271 = vrot.slane %v266, %v270
    %vm289 = vcmask 1041409
    %v290 = vsel %vm289, %v220, %v218
    %vm291 = vcmask 1042434
    %v292 = vsel %vm291, %v222, %v290
    %vm293 = vcmask 1043459
    %v294 = vsel %vm293, %v224, %v292
    %vm295 = vcmask 1044484
    %v296 = vsel %vm295, %v226, %v294
    %vm297 = vcmask 1045509
    %v298 = vsel %vm297, %v228, %v296
    %vm299 = vcmask 1046534
    %v300 = vsel %vm299, %v230, %v298
    %vm301 = vcmask 1047559
    %v302 = vsel %vm301, %v232, %v300
    %v303 = vsel %vm289, %v221, %v219
    %v304 = vsel %vm291, %v223, %v303
    %v305 = vsel %vm293, %v225, %v304
    %v306 = vsel %vm295, %v227, %v305
    %v307 = vsel %vm297, %v229, %v306
    %v308 = vsel %vm299, %v231, %v307
    %v309 = vsel %vm301, %v233, %v308
    %312 = vmatprep.subr.mxu0 0.0
    %313 = vmatpush1.msra.mxu0 %v234
    %314 = vmatprep.subr.mxu0 0.0
    %315 = vmatpush1.msra.mxu0 %v235
    %316 = vmatprep.subr.mxu0 0.0
    %317 = vmatpush1.msra.mxu0 %v236
    %318 = vmatprep.subr.mxu0 0.0
    %319 = vmatpush1.msra.mxu0 %v237
    %320 = vmatprep.subr.mxu0 0.0
    %321 = vmatpush1.msra.mxu0 %v238
    %322 = vmatprep.subr.mxu0 0.0
    %323 = vmatpush1.msra.mxu0 %v239
    %324 = vmatprep.subr.mxu0 0.0
    %325 = vmatpush1.msra.mxu0 %v240
    %326 = vmatprep.subr.mxu0 0.0
    %327 = vmatpush1.msra.mxu0 %v241
    %328 = vmatprep.subr.mxu0 0.0
    %329 = vmatpush1.msra.mxu0 %v242
    %330 = vmatprep.subr.mxu0 0.0
    %331 = vmatpush1.msra.mxu0 %v243
    %332 = vmatprep.subr.mxu0 0.0
    %333 = vmatpush1.msra.mxu0 %v244
    %334 = vmatprep.subr.mxu0 0.0
    %335 = vmatpush1.msra.mxu0 %v245
    %336 = vmatprep.subr.mxu0 0.0
    %337 = vmatpush1.msra.mxu0 %v246
    %338 = vmatprep.subr.mxu0 0.0
    %339 = vmatpush1.msra.mxu0 %v247
    %340 = vmatprep.subr.mxu0 0.0
    %341 = vmatpush1.msra.mxu0 %v248
    %342 = vmatprep.subr.mxu0 0.0
    %343 = vmatpush1.msra.mxu0 %v249
    %344 = vmatprep.subr.mxu0 0.0
    %345 = vmatpush1.msra.mxu0 %v250
    %346 = vmatprep.subr.mxu0 0.0
    %347 = vmatpush1.msra.mxu0 %v251
    %348 = vmatprep.subr.mxu0 0.0
    %349 = vmatpush1.msra.mxu0 %v252
    %350 = vmatprep.subr.mxu0 0.0
    %351 = vmatpush1.msra.mxu0 %v253
    %352 = vmatprep.subr.mxu0 0.0
    %353 = vmatpush1.msra.mxu0 %v254
    %354 = vmatprep.subr.mxu0 0.0
    %355 = vmatpush1.msra.mxu0 %v255
    %356 = vmatprep.subr.mxu0 0.0
    %357 = vmatpush1.msra.mxu0 %v256
    %358 = vmatprep.subr.mxu0 0.0
    %359 = vmatpush1.msra.mxu0 %v257
    %360 = vmatprep.subr.mxu0 0.0
    %361 = vmatpush1.msra.mxu0 %v258
    %362 = vmatprep.subr.mxu0 0.0
    %363 = vmatpush1.msra.mxu0 %v259
    %364 = vmatprep.subr.mxu0 0.0
    %365 = vmatpush1.msra.mxu0 %v260
    %366 = vmatprep.subr.mxu0 0.0
    %367 = vmatpush1.msra.mxu0 %v261
    %368 = vmatprep.subr.mxu0 0.0
    %369 = vmatpush1.msra.mxu0 %v262
    %370 = vmatprep.subr.mxu0 0.0
    %371 = vmatpush1.msra.mxu0 %v263
    %372 = vmatprep.subr.mxu0 0.0
    %373 = vmatpush1.msra.mxu0 %v264
    %374 = vmatprep.subr.mxu0 0.0
    %375 = vmatpush1.msra.mxu0 %v265
    %376 = vmatprep.mubr.f32.mxu0 %v309
    %377 = vmatmul.mubr.f32.gmra.mrb[0].mxu0 %v302
    %v378 = vpop.f32.mrb[0].mxu0
    %v379 = vadd.f32 %v271, %v378
    %v380 = vpop.f32.mrb[0].mxu0
    %381 = vdwg.mxu0
    %v382 = vld [vmem:[%s3] sm:$0x1]
    %v383 = vld [vmem:[%s6] sm:$0x1]
    %v384 = vadd.f32 %v383, 1e-05
    %v385 = vrsqrt.pop %v384
    %v386 = vmul.f32 %v382, %v385
    %v387 = vld [vmem:[%s4] sm:$0x1]
    %v388 = vld [vmem:[%s5] sm:$0x1]
    %v389 = vmul.f32 %v388, %v386
    %v390 = vsub.f32 %v387, %v389
    %v392 = vlaneseq
    %v393 = vshrl.u32 %v392, 7
    %v394 = vsub.s32 0, %v393
    %v395 = vrot.slane %v386, %v394
    %v397 = vmul.f32 %v379, %v395
    %v399 = vlaneseq
    %v400 = vshrl.u32 %v399, 7
    %v401 = vsub.s32 0, %v400
    %v402 = vrot.slane %v390, %v401
    %v404 = vadd.f32 %v397, %v402
    %v405 = vmax.f32 %v404, 0.0
    %v406 = vld [vmem:[#allocation7] sm:$0xff]
    %v407 = vld [vmem:[#allocation7 + $0x8] sm:$0xff]
    %v408 = vld [vmem:[#allocation7 + $0x10] sm:$0xff]
    %v409 = vld [vmem:[#allocation7 + $0x18] sm:$0xff]
    %v410 = vld [vmem:[#allocation7 + $0x20] sm:$0xff]
    %v411 = vld [vmem:[#allocation7 + $0x28] sm:$0xff]
    %v412 = vld [vmem:[#allocation7 + $0x30] sm:$0xff]
    %v413 = vld [vmem:[#allocation7 + $0x38] sm:$0xff]
    %v414 = vld [vmem:[#allocation7 + $0x40] sm:$0xff]
    %v415 = vld [vmem:[#allocation7 + $0x48] sm:$0xff]
    %v416 = vld [vmem:[#allocation7 + $0x50] sm:$0xff]
    %v417 = vld [vmem:[#allocation7 + $0x58] sm:$0xff]
    %v418 = vld [vmem:[#allocation7 + $0x60] sm:$0xff]
    %v419 = vld [vmem:[#allocation7 + $0x68] sm:$0xff]
    %v420 = vld [vmem:[#allocation7 + $0x70] sm:$0xff]
    %v421 = vld [vmem:[#allocation7 + $0x78] sm:$0xff]
    %v422 = vld [vmem:[%s8] sm:$0x1]
    %v424 = vlaneseq
    %v425 = vshrl.u32 %v424, 7
    %v426 = vsub.s32 0, %v425
    %v427 = vrot.slane %v422, %v426
    %429 = vmatprep.subr.mxu0 0.0
    %430 = vmatpush1.msra.mxu0 %v406
    %431 = vmatprep.subr.mxu0 0.0
    %432 = vmatpush1.msra.mxu0 %v407
    %433 = vmatprep.subr.mxu0 0.0
    %434 = vmatpush1.msra.mxu0 %v408
    %435 = vmatprep.subr.mxu0 0.0
    %436 = vmatpush1.msra.mxu0 %v409
    %437 = vmatprep.subr.mxu0 0.0
    %438 = vmatpush1.msra.mxu0 %v410
    %439 = vmatprep.subr.mxu0 0.0
    %440 = vmatpush1.msra.mxu0 %v411
    %441 = vmatprep.subr.mxu0 0.0
    %442 = vmatpush1.msra.mxu0 %v412
    %443 = vmatprep.subr.mxu0 0.0
    %444 = vmatpush1.msra.mxu0 %v413
    %445 = vmatprep.subr.mxu0 0.0
    %446 = vmatpush1.msra.mxu0 %v414
    %447 = vmatprep.subr.mxu0 0.0
    %448 = vmatpush1.msra.mxu0 %v415
    %449 = vmatprep.subr.mxu0 0.0
    %450 = vmatpush1.msra.mxu0 %v416
    %451 = vmatprep.subr.mxu0 0.0
    %452 = vmatpush1.msra.mxu0 %v417
    %453 = vmatprep.subr.mxu0 0.0
    %454 = vmatpush1.msra.mxu0 %v418
    %455 = vmatprep.subr.mxu0 0.0
    %456 = vmatpush1.msra.mxu0 %v419
    %457 = vmatprep.subr.mxu0 0.0
    %458 = vmatpush1.msra.mxu0 %v420
    %459 = vmatprep.subr.mxu0 0.0
    %460 = vmatpush1.msra.mxu0 %v421
    %461 = vmatprep.subr.mxu0 0.0
    %462 = vmatpush1.msra.mxu0 0.0
    %463 = vmatprep.subr.mxu0 0.0
    %464 = vmatpush1.msra.mxu0 0.0
    %465 = vmatprep.subr.mxu0 0.0
    %466 = vmatpush1.msra.mxu0 0.0
    %467 = vmatprep.subr.mxu0 0.0
    %468 = vmatpush1.msra.mxu0 0.0
    %469 = vmatprep.subr.mxu0 0.0
    %470 = vmatpush1.msra.mxu0 0.0
    %471 = vmatprep.subr.mxu0 0.0
    %472 = vmatpush1.msra.mxu0 0.0
    %473 = vmatprep.subr.mxu0 0.0
    %474 = vmatpush1.msra.mxu0 0.0
    %475 = vmatprep.subr.mxu0 0.0
    %476 = vmatpush1.msra.mxu0 0.0
    %477 = vmatprep.subr.mxu0 0.0
    %478 = vmatpush1.msra.mxu0 0.0
    %479 = vmatprep.subr.mxu0 0.0
    %480 = vmatpush1.msra.mxu0 0.0
    %481 = vmatprep.subr.mxu0 0.0
    %482 = vmatpush1.msra.mxu0 0.0
    %483 = vmatprep.subr.mxu0 0.0
    %484 = vmatpush1.msra.mxu0 0.0
    %485 = vmatprep.subr.mxu0 0.0
    %486 = vmatpush1.msra.mxu0 0.0
    %487 = vmatprep.subr.mxu0 0.0
    %488 = vmatpush1.msra.mxu0 0.0
    %489 = vmatprep.subr.mxu0 0.0
    %490 = vmatpush1.msra.mxu0 0.0
    %491 = vmatprep.subr.mxu0 0.0
    %492 = vmatpush1.msra.mxu0 0.0
    %493 = vmatprep.mubr.f32.mxu0 0.0
    %494 = vmatmul.mubr.f32.gmra.mrb[0].mxu0 %v405
    %v495 = vpop.f32.mrb[0].mxu0
    %v496 = vadd.f32 %v427, %v495
    %v497 = vpop.f32.mrb[0].mxu0
    %498 = vdwg.mxu0
    %499 = vst [vmem:[#allocation8] sm:$0xff] %v496
    // Predicated region
    $region50: #{tpu_custom_call.1} parent=1 // pred_check
      _
    $region51: #{tpu_custom_call.1} parent=1 // pred_check_branch
      %501 = sbr.rel (0) target = $region53
    $region52: #{tpu_custom_call.1} parent=1 // pred_region
      %s503 = ssub.s32 128, 128
      %504 = vsyncadd [#allocation4], %s503
      %s506 = sshll.u32 [#allocation8], 4
      %s507 = int_to_ptr.vmem [resolvable:$true] %s506
      %509 = dma.vmem_to_hbm [thread:$0]  %s507, 128, %s9, [#allocation4]
    $region53: #{tpu_custom_call.1} parent=1 // pred_fallthru
      _
    // Predicated region
    $region54: #{tpu_custom_call.1} parent=1 // pred_check
      _
    $region55: #{tpu_custom_call.1} parent=1 // pred_check_branch
      %511 = sbr.rel (0) target = $region57
    $region56: #{tpu_custom_call.1} parent=1 // pred_region
      %512 = dma.done [#allocation4], 128
    $region57: #{tpu_custom_call.1} parent=1 // pred_fallthru
      _
    %513 = vsyncpa [#allocation3], 1
    %514 = vsyncpa [#allocation6], 1
    %515 = vsyncpa [#allocation4], 1

</llo_original>
